<compile_context>
chip_gen: v7x
topology: tpu7x:2x2x1
jax: 0.10.0
libtpu: 0.0.40
codegen_flags: <defaults>
</compile_context>

<pallas_src>
import functools

import jax
import jax.numpy as jnp
from jax.experimental import pallas as pl
from jax.experimental.pallas import tpu as pltpu


def _dyrelu_apply_kernel(coef_ref, x_ref, o_ref, *, k: int):
    """coef_ref: (B, 2k) f32 in SMEM (whole array); x_ref/o_ref: (1, Rt, 128)."""
    b = pl.program_id(0)
    x = x_ref[...]                                        # (1, Rt, 128) f32
    # a_k = coef[b, kk], b_k = coef[b, k + kk]; scalar SMEM read -> vector splat.
    out = x * coef_ref[b, 0] + coef_ref[b, k]
    for kk in range(1, k):
        out = jnp.maximum(out, x * coef_ref[b, kk] + coef_ref[b, k + kk])
    o_ref[...] = out


def lang_dyrelu_forward(q, x, w1, b1, w2, b2, lambdas, init_v, *, k=2):
    """q: (B, q_dim) float32, x: (B, C, H, W) float32 (NCHW)."""
    B, C, H, W = x.shape
    N = C * H * W

    # ---- coefficient MLP hoisted out of the kernel (get_relu_coefs) --------
    # Degenerate matmul shapes (M=1, N=2k) — cheaper as plain XLA than as
    # per-grid-step MXU work inside the kernel.
    theta = jnp.maximum(q @ w1 + b1, 0.0) @ w2 + b2
    theta = 2.0 * jax.nn.sigmoid(theta) - 1.0
    coef = (theta * lambdas + init_v).astype(jnp.float32)           # (B, 2k)

    # ---- lane/sublane-dense tiling of the flattened C*H*W axis -------------
    LANE, SUB = 128, 8
    rows = -(-N // LANE)                       # ceil(N / 128)
    rows = -(-rows // SUB) * SUB               # round rows up to multiple of 8
    MAX_ROWS = 2048                            # 2048*128*4B = 1 MiB f32 / block
    row_tile = min(rows, MAX_ROWS)             # multiple of 8 by construction
    n_tiles = -(-rows // row_tile)
    rows_pad = n_tiles * row_tile
    N_pad = rows_pad * LANE

    x_flat = x.reshape(B, N)
    if N_pad != N:
        x_flat = jnp.pad(x_flat, ((0, 0), (0, N_pad - N)))
    x_tiled = x_flat.reshape(B, rows_pad, LANE)

    kernel = functools.partial(_dyrelu_apply_kernel, k=k)

    out = pl.pallas_call(
        kernel,
        out_shape=jax.ShapeDtypeStruct((B, rows_pad, LANE), jnp.float32),
        grid_spec=pltpu.PrefetchScalarGridSpec(
            num_scalar_prefetch=0,
            grid=(B, n_tiles),
            in_specs=[
                # Whole (B, 2k) coef table lives in SMEM for all grid steps.
                pl.BlockSpec(memory_space=pltpu.MemorySpace.SMEM),
                # Streaming x blocks: sublane-dense (row_tile % 8 == 0),
                # lane-dense (last dim == 128).
                pl.BlockSpec((1, row_tile, LANE), lambda b, t: (b, t, 0)),
            ],
            out_specs=pl.BlockSpec((1, row_tile, LANE), lambda b, t: (b, t, 0)),
        ),
        compiler_params=pltpu.CompilerParams(
            dimension_semantics=("parallel", "parallel")),
    )(coef, x_tiled)

    out = out.reshape(B, N_pad)
    if N_pad != N:
        out = out[:, :N]
    return out.reshape(B, C, H, W)


def _reference(q, x, w1, b1, w2, b2, lambdas, init_v, k=2):
    """Pure-JAX reference (mirrors the PyTorch math) for verification."""
    theta = jnp.maximum(q @ w1 + b1, 0.0) @ w2 + b2
    theta = 2.0 * jax.nn.sigmoid(theta) - 1.0
    coef = theta * lambdas + init_v                                 # (B, 2k)
    a = coef[:, :k]                                                 # (B, k)
    b = coef[:, k:]                                                 # (B, k)
    cand = (x[..., None] * a[:, None, None, None, :]
            + b[:, None, None, None, :])                            # (B,C,H,W,k)
    return jnp.max(cand, axis=-1)


if __name__ == "__main__":
    # Module hyper-params (small, consistent with __init__):
    q_dim, channels, reduction, k = 32, 16, 4, 2
    hidden = channels // reduction
    B, H, W = 2, 16, 16

    key = jax.random.PRNGKey(0)
    k1, k2, k3, k4, k5, k6 = jax.random.split(key, 6)

    # Deterministic synthetic parameters (nn.Linear weights are (out, in);
    # stored here transposed as (in, out) so the wrapper does q @ W).
    w1 = jax.random.normal(k1, (q_dim, hidden), jnp.float32) * 0.1
    b1 = jax.random.normal(k2, (hidden,), jnp.float32) * 0.1
    w2 = jax.random.normal(k3, (hidden, 2 * k), jnp.float32) * 0.1
    b2 = jax.random.normal(k4, (2 * k,), jnp.float32) * 0.1
    lambdas = jnp.array([1.0] * k + [0.5] * k, jnp.float32)
    init_v = jnp.array([1.0] + [0.0] * (2 * k - 1), jnp.float32)

    # Inputs: language query q (B, q_dim), visual features x NCHW (B, C, H, W).
    q = jax.random.normal(k5, (B, q_dim), jnp.float32)
    x = jax.random.normal(k6, (B, channels, H, W), jnp.float32)

    out = lang_dyrelu_forward(q, x, w1, b1, w2, b2, lambdas, init_v, k=k)
    out = jax.block_until_ready(out)

    ref = _reference(q, x, w1, b1, w2, b2, lambdas, init_v, k=k)
    assert out.shape == (B, channels, H, W)
    assert jnp.allclose(out, ref, atol=1e-5, rtol=1e-5), "mismatch vs reference"

    print("KERNEL_OK")
</pallas_src>

<mosaic_0001>
module attributes {stable_mosaic.version = 11 : i64} {
  func.func @_dyrelu_apply_kernel(%arg0: i32, %arg1: i32, %arg2: memref<2x4xf32, #tpu.memory_space<smem>>, %arg3: memref<1x32x128xf32, #tpu.memory_space<vmem>>, %arg4: memref<1x32x128xf32, #tpu.memory_space<vmem>>) attributes {dimension_semantics = [#tpu.dimension_semantics<parallel>, #tpu.dimension_semantics<parallel>], iteration_bounds = array<i64: 2, 1>, scalar_prefetch = 0 : i64, scratch_operands = 0 : i64, tpu.core_type = #tpu.core_type<tc>, window_params = [{transform_indices = @transform_0, window_bounds = array<i64: 2, 4>}, {transform_indices = @transform_1, window_bounds = array<i64: 1, 32, 128>}, {transform_indices = @transform_2, window_bounds = array<i64: 1, 32, 128>}]} {
    %c0 = arith.constant 0 : index
    %c0_0 = arith.constant 0 : index
    %c0_1 = arith.constant 0 : index
    %0 = vector.load %arg3[%c0, %c0_0, %c0_1] : memref<1x32x128xf32, #tpu.memory_space<vmem>>, vector<1x32x128xf32>
    %1 = arith.index_cast %arg0 : i32 to index
    %c0_2 = arith.constant 0 : index
    %2 = memref.load %arg2[%1, %c0_2] : memref<2x4xf32, #tpu.memory_space<smem>>
    %3 = vector.broadcast %2 : f32 to vector<1x32x128xf32>
    %4 = arith.mulf %0, %3 : vector<1x32x128xf32>
    %5 = arith.index_cast %arg0 : i32 to index
    %c2 = arith.constant 2 : index
    %6 = memref.load %arg2[%5, %c2] : memref<2x4xf32, #tpu.memory_space<smem>>
    %7 = vector.broadcast %6 : f32 to vector<1x32x128xf32>
    %8 = arith.addf %4, %7 : vector<1x32x128xf32>
    %9 = arith.index_cast %arg0 : i32 to index
    %c1 = arith.constant 1 : index
    %10 = memref.load %arg2[%9, %c1] : memref<2x4xf32, #tpu.memory_space<smem>>
    %11 = vector.broadcast %10 : f32 to vector<1x32x128xf32>
    %12 = arith.mulf %0, %11 : vector<1x32x128xf32>
    %13 = arith.index_cast %arg0 : i32 to index
    %c3 = arith.constant 3 : index
    %14 = memref.load %arg2[%13, %c3] : memref<2x4xf32, #tpu.memory_space<smem>>
    %15 = vector.broadcast %14 : f32 to vector<1x32x128xf32>
    %16 = arith.addf %12, %15 : vector<1x32x128xf32>
    %17 = arith.maximumf %8, %16 : vector<1x32x128xf32>
    %c0_3 = arith.constant 0 : index
    %c0_4 = arith.constant 0 : index
    %c0_5 = arith.constant 0 : index
    %18 = vector.load %arg4[%c0_3, %c0_4, %c0_5] : memref<1x32x128xf32, #tpu.memory_space<vmem>>, vector<1x32x128xf32>
    tpu.vector_store %arg4[%c0_3, %c0_4, %c0_5], %17 {strides = array<i32>} : memref<1x32x128xf32, #tpu.memory_space<vmem>>, vector<1x32x128xf32>,
    return
  }
  func.func @transform_0(%arg0: i32, %arg1: i32) -> (i32, i32) {
    %c0_i32 = arith.constant 0 : i32
    %c0_i32_0 = arith.constant 0 : i32
    %c0_i32_1 = arith.constant 0 : i32
    return %c0_i32, %c0_i32_0 : i32, i32
  }
  func.func @transform_1(%arg0: i32, %arg1: i32) -> (i32, i32, i32) {
    %c0_i32 = arith.constant 0 : i32
    %c0_i32_0 = arith.constant 0 : i32
    return %arg0, %arg1, %c0_i32 : i32, i32, i32
  }
  func.func @transform_2(%arg0: i32, %arg1: i32) -> (i32, i32, i32) {
    %c0_i32 = arith.constant 0 : i32
    %c0_i32_0 = arith.constant 0 : i32
    return %arg0, %arg1, %c0_i32 : i32, i32, i32
  }
}

</mosaic_0001>

<llo_original>
// kernel: tpu_custom_call.1
$region0: #{tpu_custom_call.1}
  #allocation0 [shape = 'u32[]', space=smem, size = 0x4, offset = 0x4, fixed_abs, tag = 'smem constant byte address 0x4 - core index']
  #allocation1 [shape = 'u32[144,128]{1,0:T(1,128)}', space=vmem, size = 0x12000, scoped, tag = 'internal scratch']
  %s0 = inlined_call_operand.hbm [shape: f32[2,4], index: 0, kind: input, shape index: {}]
  %s1 = inlined_call_operand.hbm [shape: f32[2,32,128], index: 1, kind: input, shape index: {}]
  %s2 = inlined_call_operand.hbm [shape: f32[2,32,128], index: 2, kind: output, shape index: {}]
  %s3 = sld [smem:[#allocation0]]
  $region49: #{tpu_custom_call.1} parent=0
    _
  %s5 = ssub.s32 1, %s3
  %s6 = scalar_select 0, %s5, %s3
  $region1: #{tpu_custom_call.1} parent=0
    #allocation2 [shape = 'u8[1024]{0}', space=smem, size = 0x400, scoped, tag = 'input window, operand 0, single buffered']
    #allocation3 [shape = 's32[2]{0}', space=sflag, size = 0x8, scoped, tag = 'scoped memory for tpu_custom_call.1']
    #allocation4 [shape = 's32[2]{0}', space=sflag, size = 0x8, scoped, tag = 'scoped memory for tpu_custom_call.1']
    #allocation5 [shape = 's32[2]{0}', space=sflag, size = 0x8, scoped, tag = 'scoped memory for tpu_custom_call.1']
    #allocation6 [shape = 'u8[32768]{0}', space=vmem, size = 0x8000, scoped, tag = 'input window, operand 1']
    #allocation7 [shape = 'u8[32768]{0}', space=vmem, size = 0x8000, scoped, tag = 'output window, operand 0']
    %7 = vsyncpa [#allocation5], 0
    %8 = vsyncpa [#allocation3], 0
    %s9 = scalar_lea.sflag [#allocation3], 1
    %10 = vsyncpa %s9, 0
    %11 = vsyncpa [#allocation4], 0
    %s12 = scalar_lea.sflag [#allocation4], 1
    %13 = vsyncpa %s12, 0
    loop: start=0, step=1, limit=4
    $region2: #{tpu_custom_call.1} parent=1 // loop_pre_header
      _
    $region3: #{tpu_custom_call.1} parent=1 // loop_header
      %s15 = sphi 0, %s19
      %p16 = scmp.ge.s32.totalorder %s15, 4
      %s22 = sphi 0, %s34
      %s23 = sphi 0, %s30
      %s24 = sphi 0, %s22
      %s25 = sphi 0, %s23
      %s26 = sphi 0, %s24
      %s27 = sphi 0, %s25
      %s35 = sphi 0, %s35
      %s37 = sphi 0, %s35
      %s38 = sphi 0, %s37
      %s52 = sphi 0, %s38
      %s60 = sphi 0, %s62
      %s63 = sphi 0, %s60
      %s64 = sphi 0, %s63
      %s80 = sphi 0, %s64
      %s88 = sphi 0, %s90
      %s91 = sphi 0, %s88
      %s92 = sphi 0, %s91
      %s108 = sphi 0, %s92
    $region4: #{tpu_custom_call.1} parent=1 // loop_header_branch
      %18 = sbr.rel (%p16) target = $region8
    $region5: #{tpu_custom_call.1} parent=1 // loop_body
      %s20 = ssub.s32 %s15, 1
      %s21 = ssub.s32 %s15, 2
      %s28 = sadd.s32 1, %s23
      %p29 = scmp.ge.s32.totalorder %s28, 1
      %s30 = scalar_select %p29, 0, %s28
      %s31 = sadd.s32 1, %s22
      %s32 = scalar_select %p29, %s31, %s22
      %p33 = scmp.ge.s32.totalorder %s32, 2
      %s34 = scalar_select %p33, 0, %s32
      %s36 = sadd.s32 %s35, 1
      %p39 = scmp.eq.s32.totalorder %s15, 1
      %p40 = scmp.ne.s32.totalorder %s35, %s37
      %p41 = scmp.eq.s32.totalorder %s15, 0
      %p42 = por %p40, %p41
      %p43 = scmp.ne.s32.totalorder %s35, %s37
      %p44 = scmp.eq.s32.totalorder %s20, 1
      %p45 = por %p43, %p44
      %p46 = scmp.ne.s32.totalorder %s37, %s38
      %p47 = scmp.eq.s32.totalorder %s20, 0
      %p48 = por %p46, %p47
      %p49 = scmp.ne.s32.totalorder %s37, %s38
      %p50 = scmp.eq.s32.totalorder %s21, 1
      %p51 = por %p49, %p50
      %p53 = scmp.ne.s32.totalorder %s38, %s52
      %p54 = scmp.eq.s32.totalorder %s21, 0
      %p55 = por %p53, %p54
      %s56 = ssub.s32 %s22, %s34
      %s57 = ssub.s32 %s23, %s30
      %s58 = sor.u32 %s56, %s57
      %p59 = scmp.eq.s32.totalorder %s58, 0
      %s61 = sadd.s32 %s60, 1
      %s62 = scalar_select %p59, %s60, %s61
      %p65 = pneg %p59
      %p66 = scmp.eq.s32.totalorder %s15, 1
      %p67 = por %p65, %p66
      %p68 = scmp.ne.s32.totalorder %s60, %s63
      %p69 = scmp.eq.s32.totalorder %s15, 0
      %p70 = por %p68, %p69
      %p71 = scmp.ne.s32.totalorder %s60, %s63
      %p72 = scmp.eq.s32.totalorder %s20, 1
      %p73 = por %p71, %p72
      %p74 = scmp.ne.s32.totalorder %s63, %s64
      %p75 = scmp.eq.s32.totalorder %s20, 0
      %p76 = por %p74, %p75
      %p77 = scmp.ne.s32.totalorder %s63, %s64
      %p78 = scmp.eq.s32.totalorder %s21, 1
      %p79 = por %p77, %p78
      %p81 = scmp.ne.s32.totalorder %s64, %s80
      %p82 = scmp.eq.s32.totalorder %s21, 0
      %p83 = por %p81, %p82
      %s84 = ssub.s32 %s22, %s34
      %s85 = ssub.s32 %s23, %s30
      %s86 = sor.u32 %s84, %s85
      %p87 = scmp.eq.s32.totalorder %s86, 0
      %s89 = sadd.s32 %s88, 1
      %s90 = scalar_select %p87, %s88, %s89
      %p93 = pneg %p87
      %p94 = scmp.eq.s32.totalorder %s15, 1
      %p95 = por %p93, %p94
      %p96 = scmp.ne.s32.totalorder %s88, %s91
      %p97 = scmp.eq.s32.totalorder %s15, 0
      %p98 = por %p96, %p97
      %p99 = scmp.ne.s32.totalorder %s88, %s91
      %p100 = scmp.eq.s32.totalorder %s20, 1
      %p101 = por %p99, %p100
      %p102 = scmp.ne.s32.totalorder %s91, %s92
      %p103 = scmp.eq.s32.totalorder %s20, 0
      %p104 = por %p102, %p103
      %p105 = scmp.ne.s32.totalorder %s91, %s92
      %p106 = scmp.eq.s32.totalorder %s21, 1
      %p107 = por %p105, %p106
      %p109 = scmp.ne.s32.totalorder %s92, %s108
      %p110 = scmp.eq.s32.totalorder %s21, 0
      %p111 = por %p109, %p110
      %p112 = scmp.le.s32.totalorder 1, %s15
      %p113 = scmp.lt.s32.totalorder %s15, 3
      %p114 = pnand %p112, %p113
      %p115 = pneg %p114
      // Predicated region
      $region9: #{tpu_custom_call.1} parent=5 // pred_check
        _
      $region10: #{tpu_custom_call.1} parent=5 // pred_check_branch
        %117 = sbr.rel (%p114) target = $region12
      $region11: #{tpu_custom_call.1} parent=5 // pred_region
        %s118 = ssub.s32 %s15, 1
        // Predicated region
        $region13: #{tpu_custom_call.1} parent=11 // pred_check
          %p119 = pneg %p48
        $region14: #{tpu_custom_call.1} parent=11 // pred_check_branch
          %121 = sbr.rel (%p119) target = $region16
        $region15: #{tpu_custom_call.1} parent=11 // pred_region
          %s123 = ssub.s32 32, 32
          %124 = vsyncadd [#allocation5], %s123
          %127 = dma.hbm_to_smem %s0, 32, [#allocation2], [#allocation5]
        $region16: #{tpu_custom_call.1} parent=11 // pred_fallthru
          _
      $region12: #{tpu_custom_call.1} parent=5 // pred_fallthru
        _
      %p128 = scmp.lt.s32.totalorder %s15, 2
      // Predicated region
      $region17: #{tpu_custom_call.1} parent=5 // pred_check
        %p129 = pneg %p128
      $region18: #{tpu_custom_call.1} parent=5 // pred_check_branch
        %131 = sbr.rel (%p129) target = $region20
      $region19: #{tpu_custom_call.1} parent=5 // pred_region
        // Predicated region
        $region21: #{tpu_custom_call.1} parent=19 // pred_check
          %p132 = pneg %p70
        $region22: #{tpu_custom_call.1} parent=19 // pred_check_branch
          %134 = sbr.rel (%p132) target = $region24
        $region23: #{tpu_custom_call.1} parent=19 // pred_region
          %s135 = sand.u32 %s60, 1
          %s136 = scalar_lea.sflag [#allocation3], %s135
          %s137 = sand.u32 %s60, 1
          %s138 = smul.addr %s137, 32
          %s139 = scalar_lea.vmem [#allocation6], %s138
          %s140 = smul.u32 4, %s23
          %s142 = ssub.s32 512, 512
          %143 = vsyncadd %s136, %s142
          %s144 = smul.addr %s22, 4
          %s145 = sadd.s32 %s140, %s144
          %s146 = smul.addr %s145, 128
          %s147 = scalar_lea.hbm %s1, %s146
          %s148 = sshll.u32 %s139, 4
          %s149 = int_to_ptr.vmem [resolvable:$true] %s148
          %154 = dma.hbm_to_vmem [thread:$0]  %s147, 512, %s149, %s136, 128, 128, 8
        $region24: #{tpu_custom_call.1} parent=19 // pred_fallthru
          _
      $region20: #{tpu_custom_call.1} parent=5 // pred_fallthru
        _
      %p155 = scmp.le.s32.totalorder 1, %s15
      %p156 = scmp.lt.s32.totalorder %s15, 3
      %p157 = pnand %p155, %p156
      %p158 = pneg %p157
      // Predicated region
      $region25: #{tpu_custom_call.1} parent=5 // pred_check
        _
      $region26: #{tpu_custom_call.1} parent=5 // pred_check_branch
        %160 = sbr.rel (%p157) target = $region28
      $region27: #{tpu_custom_call.1} parent=5 // pred_region
        %s161 = ssub.s32 %s15, 1
        // Predicated region
        $region29: #{tpu_custom_call.1} parent=27 // pred_check
          %p162 = pneg %p48
        $region30: #{tpu_custom_call.1} parent=27 // pred_check_branch
          %164 = sbr.rel (%p162) target = $region32
        $region31: #{tpu_custom_call.1} parent=27 // pred_region
          %165 = dma.done [#allocation5], 32
        $region32: #{tpu_custom_call.1} parent=27 // pred_fallthru
          _
        %s166 = sand.u32 %s63, 1
        %s167 = scalar_lea.sflag [#allocation3], %s166
        %s168 = sand.u32 %s63, 1
        %s169 = smul.addr %s168, 32
        %s170 = scalar_lea.vmem [#allocation6], %s169
        // Predicated region
        $region33: #{tpu_custom_call.1} parent=27 // pred_check
          %p171 = pneg %p76
        $region34: #{tpu_custom_call.1} parent=27 // pred_check_branch
          %173 = sbr.rel (%p171) target = $region36
        $region35: #{tpu_custom_call.1} parent=27 // pred_region
          %174 = dma.done %s167, 512
        $region36: #{tpu_custom_call.1} parent=27 // pred_fallthru
          _
        %175 = sfence
        %p176 = pneg %p48
        %p177 = pneg %p45
        %s178 = sand.u32 %s63, 1
        %s179 = scalar_lea.sflag [#allocation3], %s178
        %s180 = sand.u32 %s63, 1
        %s181 = smul.addr %s180, 32
        %s182 = scalar_lea.vmem [#allocation6], %s181
        %p183 = pneg %p76
        %p184 = pneg %p73
        %p185 = pneg %p104
        %p186 = pneg %p101
        %s187 = sand.u32 %s91, 1
        %s188 = scalar_lea.sflag [#allocation4], %s187
        %s189 = sand.u32 %s91, 1
        %s190 = smul.addr %s189, 32
        %s191 = scalar_lea.vmem [#allocation7], %s190
        %s192 = smul.u32 4, %s25
        %s193 = smul.u32 4, %s25
        %v194 = vld [vmem:[%s170] sm:$0xff]
        %v195 = vld [vmem:[%s170 + $0x8] sm:$0xff]
        %v196 = vld [vmem:[%s170 + $0x10] sm:$0xff]
        %v197 = vld [vmem:[%s170 + $0x18] sm:$0xff]
        %s198 = smul.u32 %s24, 128
        %s199 = sld [smem:[#allocation2 + %s198]]
        %v200 = vstv %s199
        %v201 = vmul.f32 %v194, %v200
        %v202 = vmul.f32 %v195, %v200
        %v203 = vmul.f32 %v196, %v200
        %v204 = vmul.f32 %v197, %v200
        %s205 = sadd.s32 %s198, 2
        %s206 = sld [smem:[#allocation2 + %s205]]
        %v207 = vstv %s206
        %v208 = vadd.f32 %v201, %v207
        %v209 = vadd.f32 %v202, %v207
        %v210 = vadd.f32 %v203, %v207
        %v211 = vadd.f32 %v204, %v207
        %s212 = sadd.s32 %s198, 1
        %s213 = sld [smem:[#allocation2 + %s212]]
        %v214 = vstv %s213
        %v215 = vmul.f32 %v194, %v214
        %v216 = vmul.f32 %v195, %v214
        %v217 = vmul.f32 %v196, %v214
        %v218 = vmul.f32 %v197, %v214
        %s219 = sadd.s32 %s198, 3
        %s220 = sld [smem:[#allocation2 + %s219]]
        %v221 = vstv %s220
        %v222 = vadd.f32 %v215, %v221
        %v223 = vadd.f32 %v216, %v221
        %v224 = vadd.f32 %v217, %v221
        %v225 = vadd.f32 %v218, %v221
        %v226 = vmax.f32 %v208, %v222
        %v227 = vmax.f32 %v209, %v223
        %v228 = vmax.f32 %v210, %v224
        %v229 = vmax.f32 %v211, %v225
        %230 = vst [vmem:[%s191] sm:$0xff] %v226
        %231 = vst [vmem:[%s191 + $0x8] sm:$0xff] %v227
        %232 = vst [vmem:[%s191 + $0x10] sm:$0xff] %v228
        %233 = vst [vmem:[%s191 + $0x18] sm:$0xff] %v229
        %s234 = sand.u32 %s91, 1
        %s235 = scalar_lea.sflag [#allocation4], %s234
        %s236 = sand.u32 %s91, 1
        %s237 = smul.addr %s236, 32
        %s238 = scalar_lea.vmem [#allocation7], %s237
        // Predicated region
        $region37: #{tpu_custom_call.1} parent=27 // pred_check
          %p239 = pneg %p101
        $region38: #{tpu_custom_call.1} parent=27 // pred_check_branch
          %241 = sbr.rel (%p239) target = $region40
        $region39: #{tpu_custom_call.1} parent=27 // pred_region
          %s242 = smul.u32 4, %s25
          %s244 = ssub.s32 512, 512
          %245 = vsyncadd %s235, %s244
          %s246 = smul.addr %s24, 4
          %s247 = sadd.s32 %s242, %s246
          %s248 = smul.addr %s247, 128
          %s249 = scalar_lea.hbm %s2, %s248
          %s250 = sshll.u32 %s238, 4
          %s251 = int_to_ptr.vmem [resolvable:$true] %s250
          %256 = dma.vmem_to_hbm [thread:$0]  %s251, 512, %s249, %s235, 128, 128, 8
        $region40: #{tpu_custom_call.1} parent=27 // pred_fallthru
          _
      $region28: #{tpu_custom_call.1} parent=5 // pred_fallthru
        _
      %p257 = scmp.le.s32.totalorder 2, %s15
      // Predicated region
      $region41: #{tpu_custom_call.1} parent=5 // pred_check
        %p258 = pneg %p257
      $region42: #{tpu_custom_call.1} parent=5 // pred_check_branch
        %260 = sbr.rel (%p258) target = $region44
      $region43: #{tpu_custom_call.1} parent=5 // pred_region
        %s261 = ssub.s32 %s15, 2
        // Predicated region
        $region45: #{tpu_custom_call.1} parent=43 // pred_check
          %p262 = pneg %p107
        $region46: #{tpu_custom_call.1} parent=43 // pred_check_branch
          %264 = sbr.rel (%p262) target = $region48
        $region47: #{tpu_custom_call.1} parent=43 // pred_region
          %s265 = sand.u32 %s92, 1
          %s266 = scalar_lea.sflag [#allocation4], %s265
          %s267 = sand.u32 %s92, 1
          %s268 = smul.addr %s267, 32
          %s269 = scalar_lea.vmem [#allocation7], %s268
          %270 = dma.done %s266, 512
        $region48: #{tpu_custom_call.1} parent=43 // pred_fallthru
          _
      $region44: #{tpu_custom_call.1} parent=5 // pred_fallthru
        _
    $region6: #{tpu_custom_call.1} parent=1 // loop_footer
      %s19 = sadd.s32 1, %s15
    $region7: #{tpu_custom_call.1} parent=1 // loop_footer_branch
      %14 = sbr.rel target = $region3
    $region8: #{tpu_custom_call.1} parent=1 // loop_exit
      _
    %271 = vsyncpa [#allocation3], 1
    %s272 = scalar_lea.sflag [#allocation3], 1
    %273 = vsyncpa %s272, 1
    %274 = vsyncpa [#allocation4], 1
    %s275 = scalar_lea.sflag [#allocation4], 1
    %276 = vsyncpa %s275, 1
    %277 = vsyncpa [#allocation5], 1
    %s278 = scalar_lea.sflag [#allocation5], 1
    %279 = vsyncpa %s278, 1

</llo_original>
